<compile_context>
chip_gen: v7x
topology: tpu7x:2x2x1
jax: 0.10.0
libtpu: 0.0.40
codegen_flags: <defaults>
</compile_context>

<pallas_src>
import jax
import jax.numpy as jnp
from jax.experimental import pallas as pl
from jax.experimental.pallas import tpu as pltpu


LANE_COLS = 512          # slab width: multiple of 128 -> unmasked vector stores
SUBLANE = 8              # f32 sublane tile
_UNIT = SUBLANE * LANE_COLS  # 4096 elements: minimal aligned slab granule


def _linreg_kernel(wb_ref, x_ref, o_ref):
    # wb_ref: (2,) f32 in SMEM: [weight, bias]
    # x_ref / o_ref: (tile_rows, LANE_COLS) tiles in VMEM.
    w = wb_ref[0]
    b = wb_ref[1]
    o_ref[...] = (x_ref[...].astype(jnp.float32) * w + b).astype(o_ref.dtype)


def linear_regression_forward(
    x: jax.Array,
    weight: jax.Array,
    bias: jax.Array,
    *,
    max_tile_rows: int = 2048,        # 2048 x 512 f32 = 4 MiB per tile
    pallas_min_elems: int = _UNIT,    # below this, skip pallas_call entirely
) -> jax.Array:
    """x: (..., 1); weight: (1, 1); bias: (1,) -> same shape as x."""
    orig_shape = x.shape
    w = weight.reshape(()).astype(jnp.float32)
    b = bias.reshape(()).astype(jnp.float32)

    flat = x.reshape(-1)
    total = flat.shape[0]

    # ---- small-input fast path: launch/reshape overhead would dominate ----
    if total < pallas_min_elems:
        out = (flat.astype(jnp.float32) * w + b).astype(x.dtype)
        return out.reshape(orig_shape)

    # ---- aligned prefix through the Pallas kernel (no pad, no slice) ----
    aligned = (total // _UNIT) * _UNIT
    rows = aligned // LANE_COLS                     # multiple of 8

    # Balanced tiling: ~4 MiB tiles, >=2 tiles when possible (v7x has 2 TCs),
    # last block may be partial (Pallas masks the out-of-bounds region).
    min_tiles = 2 if rows >= 2 * SUBLANE else 1
    want_tiles = max(min_tiles, pl.cdiv(rows, max_tile_rows))
    tile_rows = ((pl.cdiv(rows, want_tiles) + SUBLANE - 1) // SUBLANE) * SUBLANE
    num_tiles = pl.cdiv(rows, tile_rows)

    x2d = flat[:aligned].reshape(rows, LANE_COLS)   # free when aligned == total
    wb = jnp.stack([w, b])                          # (2,) f32 -> SMEM

    itemsize = jnp.dtype(x.dtype).itemsize
    out2d = pl.pallas_call(
        _linreg_kernel,
        out_shape=jax.ShapeDtypeStruct((rows, LANE_COLS), x.dtype),
        grid=(num_tiles,),
        in_specs=[
            pl.BlockSpec(memory_space=pltpu.MemorySpace.SMEM),        # wb
            pl.BlockSpec((tile_rows, LANE_COLS), lambda i: (i, 0)),   # x2d
        ],
        out_specs=pl.BlockSpec((tile_rows, LANE_COLS), lambda i: (i, 0)),
        compiler_params=pltpu.CompilerParams(
            dimension_semantics=("parallel",),
            vmem_limit_bytes=32 << 20,
        ),
        cost_estimate=pl.CostEstimate(
            flops=2 * rows * LANE_COLS,
            bytes_accessed=2 * rows * LANE_COLS * itemsize,
            transcendentals=0,
        ),
    )(wb, x2d)

    out_flat = out2d.reshape(-1)

    # ---- tiny (< 4096 elem) tail, if the input was not slab-aligned ----
    if aligned != total:
        tail = flat[aligned:]
        tail_out = (tail.astype(jnp.float32) * w + b).astype(x.dtype)
        out_flat = jnp.concatenate([out_flat, tail_out])

    return out_flat.reshape(orig_shape)


if __name__ == "__main__":
    # Deterministic parameters (shapes from nn.Linear(1, 1)).
    weight = jnp.array([[0.7]], dtype=jnp.float32)   # (out_features, in_features)
    bias = jnp.array([0.3], dtype=jnp.float32)       # (out_features,)

    key = jax.random.PRNGKey(0)

    # 1) Small batch -> fused-XLA fast path (no pallas_call).
    x_small = jax.random.normal(key, (8, 1), dtype=jnp.float32)
    y_small = jax.block_until_ready(linear_regression_forward(x_small, weight, bias))
    assert y_small.shape == x_small.shape
    assert jnp.allclose(y_small, x_small @ weight.T + bias, atol=1e-6)

    # 2) Slab-aligned batch -> pure Pallas path (no pad / slice / concat),
    #    2 grid tiles so the "parallel" axis can feed both v7x TensorCores.
    x_big = jax.random.normal(jax.random.PRNGKey(1), (8192, 1), dtype=jnp.float32)
    y_big = jax.block_until_ready(linear_regression_forward(x_big, weight, bias))
    assert y_big.shape == x_big.shape
    assert jnp.allclose(y_big, x_big @ weight.T + bias, atol=1e-6)

    # 3) Unaligned batch -> Pallas on the aligned prefix + tiny jnp tail.
    x_odd = jax.random.normal(jax.random.PRNGKey(2), (8292, 1), dtype=jnp.float32)
    y_odd = jax.block_until_ready(linear_regression_forward(x_odd, weight, bias))
    assert y_odd.shape == x_odd.shape
    assert jnp.allclose(y_odd, x_odd @ weight.T + bias, atol=1e-6)

    print("KERNEL_OK")
</pallas_src>

<mosaic_0001>
module attributes {stable_mosaic.version = 11 : i64} {
  func.func @_linreg_kernel(%arg0: i32, %arg1: memref<2xf32, #tpu.memory_space<smem>>, %arg2: memref<8x512xf32, #tpu.memory_space<vmem>>, %arg3: memref<8x512xf32, #tpu.memory_space<vmem>>) attributes {dimension_semantics = [#tpu.dimension_semantics<parallel>], iteration_bounds = array<i64: 2>, scalar_prefetch = 0 : i64, scratch_operands = 0 : i64, tpu.core_type = #tpu.core_type<tc>, window_params = [{transform_indices = @transform_0, window_bounds = array<i64: 2>}, {transform_indices = @transform_1, window_bounds = array<i64: 8, 512>}, {transform_indices = @transform_2, window_bounds = array<i64: 8, 512>}]} {
    %c0 = arith.constant 0 : index
    %0 = memref.load %arg1[%c0] : memref<2xf32, #tpu.memory_space<smem>>
    %c1 = arith.constant 1 : index
    %1 = memref.load %arg1[%c1] : memref<2xf32, #tpu.memory_space<smem>>
    %c0_0 = arith.constant 0 : index
    %c0_1 = arith.constant 0 : index
    %2 = vector.load %arg2[%c0_0, %c0_1] : memref<8x512xf32, #tpu.memory_space<vmem>>, vector<8x512xf32>
    %3 = vector.broadcast %0 : f32 to vector<8x512xf32>
    %4 = arith.mulf %2, %3 : vector<8x512xf32>
    %5 = vector.broadcast %1 : f32 to vector<8x512xf32>
    %6 = arith.addf %4, %5 : vector<8x512xf32>
    %c0_2 = arith.constant 0 : index
    %c0_3 = arith.constant 0 : index
    %7 = vector.load %arg3[%c0_2, %c0_3] : memref<8x512xf32, #tpu.memory_space<vmem>>, vector<8x512xf32>
    tpu.vector_store %arg3[%c0_2, %c0_3], %6 {strides = array<i32>} : memref<8x512xf32, #tpu.memory_space<vmem>>, vector<8x512xf32>,
    return
  }
  func.func @transform_0(%arg0: i32) -> i32 {
    %c0_i32 = arith.constant 0 : i32
    %c0_i32_0 = arith.constant 0 : i32
    return %c0_i32 : i32
  }
  func.func @transform_1(%arg0: i32) -> (i32, i32) {
    %c0_i32 = arith.constant 0 : i32
    %c0_i32_0 = arith.constant 0 : i32
    return %arg0, %c0_i32 : i32, i32
  }
  func.func @transform_2(%arg0: i32) -> (i32, i32) {
    %c0_i32 = arith.constant 0 : i32
    %c0_i32_0 = arith.constant 0 : i32
    return %arg0, %c0_i32 : i32, i32
  }
}

</mosaic_0001>

<llo_original>
// kernel: tpu_custom_call.1
$region0: #{tpu_custom_call.1}
  #allocation0 [shape = 'u32[]', space=smem, size = 0x4, offset = 0x4, fixed_abs, tag = 'smem constant byte address 0x4 - core index']
  #allocation1 [shape = 'u32[144,128]{1,0:T(1,128)}', space=vmem, size = 0x12000, scoped, tag = 'internal scratch']
  %s0 = inlined_call_operand.hbm [shape: f32[2], index: 0, kind: input, shape index: {}]
  %s1 = inlined_call_operand.hbm [shape: f32[16,512], index: 1, kind: input, shape index: {}]
  %s2 = inlined_call_operand.hbm [shape: f32[16,512], index: 2, kind: output, shape index: {}]
  %s3 = sld [smem:[#allocation0]]
  $region49: #{tpu_custom_call.1} parent=0
    _
  %s5 = ssub.s32 1, %s3
  %s6 = scalar_select 0, %s5, %s3
  $region1: #{tpu_custom_call.1} parent=0
    #allocation2 [shape = 'u8[512]{0}', space=smem, size = 0x200, scoped, tag = 'input window, operand 0, single buffered']
    #allocation3 [shape = 's32[2]{0}', space=sflag, size = 0x8, scoped, tag = 'scoped memory for tpu_custom_call.1']
    #allocation4 [shape = 's32[2]{0}', space=sflag, size = 0x8, scoped, tag = 'scoped memory for tpu_custom_call.1']
    #allocation5 [shape = 's32[2]{0}', space=sflag, size = 0x8, scoped, tag = 'scoped memory for tpu_custom_call.1']
    #allocation6 [shape = 'u8[32768]{0}', space=vmem, size = 0x8000, scoped, tag = 'input window, operand 1']
    #allocation7 [shape = 'u8[32768]{0}', space=vmem, size = 0x8000, scoped, tag = 'output window, operand 0']
    %7 = vsyncpa [#allocation5], 0
    %8 = vsyncpa [#allocation3], 0
    %s9 = scalar_lea.sflag [#allocation3], 1
    %10 = vsyncpa %s9, 0
    %11 = vsyncpa [#allocation4], 0
    %s12 = scalar_lea.sflag [#allocation4], 1
    %13 = vsyncpa %s12, 0
    loop: start=0, step=1, limit=4
    $region2: #{tpu_custom_call.1} parent=1 // loop_pre_header
      _
    $region3: #{tpu_custom_call.1} parent=1 // loop_header
      %s15 = sphi 0, %s19
      %p16 = scmp.ge.s32.totalorder %s15, 4
      %s23 = sphi 0, %s23
      %s25 = sphi 0, %s23
      %s26 = sphi 0, %s25
      %s40 = sphi 0, %s26
      %s46 = sphi 0, %s48
      %s49 = sphi 0, %s46
      %s50 = sphi 0, %s49
      %s66 = sphi 0, %s50
      %s72 = sphi 0, %s74
      %s75 = sphi 0, %s72
      %s76 = sphi 0, %s75
      %s92 = sphi 0, %s76
    $region4: #{tpu_custom_call.1} parent=1 // loop_header_branch
      %18 = sbr.rel (%p16) target = $region8
    $region5: #{tpu_custom_call.1} parent=1 // loop_body
      %s20 = ssub.s32 %s15, 1
      %s21 = ssub.s32 %s15, 2
      %s22 = sadd.s32 %s15, 1
      %s24 = sadd.s32 %s23, 1
      %p27 = scmp.eq.s32.totalorder %s15, 1
      %p28 = scmp.ne.s32.totalorder %s23, %s25
      %p29 = scmp.eq.s32.totalorder %s15, 0
      %p30 = por %p28, %p29
      %p31 = scmp.ne.s32.totalorder %s23, %s25
      %p32 = scmp.eq.s32.totalorder %s20, 1
      %p33 = por %p31, %p32
      %p34 = scmp.ne.s32.totalorder %s25, %s26
      %p35 = scmp.eq.s32.totalorder %s20, 0
      %p36 = por %p34, %p35
      %p37 = scmp.ne.s32.totalorder %s25, %s26
      %p38 = scmp.eq.s32.totalorder %s21, 1
      %p39 = por %p37, %p38
      %p41 = scmp.ne.s32.totalorder %s26, %s40
      %p42 = scmp.eq.s32.totalorder %s21, 0
      %p43 = por %p41, %p42
      %s44 = ssub.s32 %s15, %s22
      %p45 = scmp.eq.s32.totalorder %s44, 0
      %s47 = sadd.s32 %s46, 1
      %s48 = scalar_select %p45, %s46, %s47
      %p51 = pneg %p45
      %p52 = scmp.eq.s32.totalorder %s15, 1
      %p53 = por %p51, %p52
      %p54 = scmp.ne.s32.totalorder %s46, %s49
      %p55 = scmp.eq.s32.totalorder %s15, 0
      %p56 = por %p54, %p55
      %p57 = scmp.ne.s32.totalorder %s46, %s49
      %p58 = scmp.eq.s32.totalorder %s20, 1
      %p59 = por %p57, %p58
      %p60 = scmp.ne.s32.totalorder %s49, %s50
      %p61 = scmp.eq.s32.totalorder %s20, 0
      %p62 = por %p60, %p61
      %p63 = scmp.ne.s32.totalorder %s49, %s50
      %p64 = scmp.eq.s32.totalorder %s21, 1
      %p65 = por %p63, %p64
      %p67 = scmp.ne.s32.totalorder %s50, %s66
      %p68 = scmp.eq.s32.totalorder %s21, 0
      %p69 = por %p67, %p68
      %s70 = ssub.s32 %s15, %s22
      %p71 = scmp.eq.s32.totalorder %s70, 0
      %s73 = sadd.s32 %s72, 1
      %s74 = scalar_select %p71, %s72, %s73
      %p77 = pneg %p71
      %p78 = scmp.eq.s32.totalorder %s15, 1
      %p79 = por %p77, %p78
      %p80 = scmp.ne.s32.totalorder %s72, %s75
      %p81 = scmp.eq.s32.totalorder %s15, 0
      %p82 = por %p80, %p81
      %p83 = scmp.ne.s32.totalorder %s72, %s75
      %p84 = scmp.eq.s32.totalorder %s20, 1
      %p85 = por %p83, %p84
      %p86 = scmp.ne.s32.totalorder %s75, %s76
      %p87 = scmp.eq.s32.totalorder %s20, 0
      %p88 = por %p86, %p87
      %p89 = scmp.ne.s32.totalorder %s75, %s76
      %p90 = scmp.eq.s32.totalorder %s21, 1
      %p91 = por %p89, %p90
      %p93 = scmp.ne.s32.totalorder %s76, %s92
      %p94 = scmp.eq.s32.totalorder %s21, 0
      %p95 = por %p93, %p94
      %p96 = scmp.le.s32.totalorder 1, %s15
      %p97 = scmp.lt.s32.totalorder %s15, 3
      %p98 = pnand %p96, %p97
      %p99 = pneg %p98
      // Predicated region
      $region9: #{tpu_custom_call.1} parent=5 // pred_check
        _
      $region10: #{tpu_custom_call.1} parent=5 // pred_check_branch
        %101 = sbr.rel (%p98) target = $region12
      $region11: #{tpu_custom_call.1} parent=5 // pred_region
        %s102 = ssub.s32 %s15, 1
        // Predicated region
        $region13: #{tpu_custom_call.1} parent=11 // pred_check
          %p103 = pneg %p36
        $region14: #{tpu_custom_call.1} parent=11 // pred_check_branch
          %105 = sbr.rel (%p103) target = $region16
        $region15: #{tpu_custom_call.1} parent=11 // pred_region
          %s107 = ssub.s32 16, 16
          %108 = vsyncadd [#allocation5], %s107
          %111 = dma.hbm_to_smem %s0, 16, [#allocation2], [#allocation5]
        $region16: #{tpu_custom_call.1} parent=11 // pred_fallthru
          _
      $region12: #{tpu_custom_call.1} parent=5 // pred_fallthru
        _
      %p112 = scmp.lt.s32.totalorder %s15, 2
      // Predicated region
      $region17: #{tpu_custom_call.1} parent=5 // pred_check
        %p113 = pneg %p112
      $region18: #{tpu_custom_call.1} parent=5 // pred_check_branch
        %115 = sbr.rel (%p113) target = $region20
      $region19: #{tpu_custom_call.1} parent=5 // pred_region
        // Predicated region
        $region21: #{tpu_custom_call.1} parent=19 // pred_check
          %p116 = pneg %p56
        $region22: #{tpu_custom_call.1} parent=19 // pred_check_branch
          %118 = sbr.rel (%p116) target = $region24
        $region23: #{tpu_custom_call.1} parent=19 // pred_region
          %s119 = sand.u32 %s46, 1
          %s120 = scalar_lea.sflag [#allocation3], %s119
          %s121 = sand.u32 %s46, 1
          %s122 = smul.addr %s121, 32
          %s123 = scalar_lea.vmem [#allocation6], %s122
          %s125 = ssub.s32 512, 512
          %126 = vsyncadd %s120, %s125
          %s127 = smul.addr %s15, 4
          %s128 = smul.addr %s127, 128
          %s129 = scalar_lea.hbm %s1, %s128
          %s131 = sshll.u32 %s123, 4
          %s132 = int_to_ptr.vmem [resolvable:$true] %s131
          %134 = dma.hbm_to_vmem [thread:$0]  %s129, 512, %s132, %s120
        $region24: #{tpu_custom_call.1} parent=19 // pred_fallthru
          _
      $region20: #{tpu_custom_call.1} parent=5 // pred_fallthru
        _
      %p135 = scmp.le.s32.totalorder 1, %s15
      %p136 = scmp.lt.s32.totalorder %s15, 3
      %p137 = pnand %p135, %p136
      %p138 = pneg %p137
      // Predicated region
      $region25: #{tpu_custom_call.1} parent=5 // pred_check
        _
      $region26: #{tpu_custom_call.1} parent=5 // pred_check_branch
        %140 = sbr.rel (%p137) target = $region28
      $region27: #{tpu_custom_call.1} parent=5 // pred_region
        %s141 = ssub.s32 %s15, 1
        // Predicated region
        $region29: #{tpu_custom_call.1} parent=27 // pred_check
          %p142 = pneg %p36
        $region30: #{tpu_custom_call.1} parent=27 // pred_check_branch
          %144 = sbr.rel (%p142) target = $region32
        $region31: #{tpu_custom_call.1} parent=27 // pred_region
          %145 = dma.done [#allocation5], 16
        $region32: #{tpu_custom_call.1} parent=27 // pred_fallthru
          _
        %s146 = sand.u32 %s49, 1
        %s147 = scalar_lea.sflag [#allocation3], %s146
        %s148 = sand.u32 %s49, 1
        %s149 = smul.addr %s148, 32
        %s150 = scalar_lea.vmem [#allocation6], %s149
        // Predicated region
        $region33: #{tpu_custom_call.1} parent=27 // pred_check
          %p151 = pneg %p62
        $region34: #{tpu_custom_call.1} parent=27 // pred_check_branch
          %153 = sbr.rel (%p151) target = $region36
        $region35: #{tpu_custom_call.1} parent=27 // pred_region
          %154 = dma.done %s147, 512
        $region36: #{tpu_custom_call.1} parent=27 // pred_fallthru
          _
        %155 = sfence
        %p156 = pneg %p36
        %p157 = pneg %p33
        %s158 = sand.u32 %s49, 1
        %s159 = scalar_lea.sflag [#allocation3], %s158
        %s160 = sand.u32 %s49, 1
        %s161 = smul.addr %s160, 32
        %s162 = scalar_lea.vmem [#allocation6], %s161
        %p163 = pneg %p62
        %p164 = pneg %p59
        %p165 = pneg %p88
        %p166 = pneg %p85
        %s167 = sand.u32 %s75, 1
        %s168 = scalar_lea.sflag [#allocation4], %s167
        %s169 = sand.u32 %s75, 1
        %s170 = smul.addr %s169, 32
        %s171 = scalar_lea.vmem [#allocation7], %s170
        %s172 = sld [smem:[#allocation2]]
        %s173 = sld [smem:[#allocation2 + $0x1]]
        %v174 = vld [vmem:[%s150] sm:$0xff]
        %v175 = vld [vmem:[%s150 + $0x8] sm:$0xff]
        %v176 = vld [vmem:[%s150 + $0x10] sm:$0xff]
        %v177 = vld [vmem:[%s150 + $0x18] sm:$0xff]
        %v178 = vstv %s172
        %v179 = vmul.f32 %v174, %v178
        %v180 = vmul.f32 %v175, %v178
        %v181 = vmul.f32 %v176, %v178
        %v182 = vmul.f32 %v177, %v178
        %v183 = vstv %s173
        %v184 = vadd.f32 %v179, %v183
        %v185 = vadd.f32 %v180, %v183
        %v186 = vadd.f32 %v181, %v183
        %v187 = vadd.f32 %v182, %v183
        %188 = vst [vmem:[%s171] sm:$0xff] %v184
        %189 = vst [vmem:[%s171 + $0x8] sm:$0xff] %v185
        %190 = vst [vmem:[%s171 + $0x10] sm:$0xff] %v186
        %191 = vst [vmem:[%s171 + $0x18] sm:$0xff] %v187
        %s192 = sand.u32 %s75, 1
        %s193 = scalar_lea.sflag [#allocation4], %s192
        %s194 = sand.u32 %s75, 1
        %s195 = smul.addr %s194, 32
        %s196 = scalar_lea.vmem [#allocation7], %s195
        // Predicated region
        $region37: #{tpu_custom_call.1} parent=27 // pred_check
          %p197 = pneg %p85
        $region38: #{tpu_custom_call.1} parent=27 // pred_check_branch
          %199 = sbr.rel (%p197) target = $region40
        $region39: #{tpu_custom_call.1} parent=27 // pred_region
          %s201 = ssub.s32 512, 512
          %202 = vsyncadd %s193, %s201
          %s203 = smul.addr %s20, 4
          %s204 = smul.addr %s203, 128
          %s205 = scalar_lea.hbm %s2, %s204
          %s207 = sshll.u32 %s196, 4
          %s208 = int_to_ptr.vmem [resolvable:$true] %s207
          %210 = dma.vmem_to_hbm [thread:$0]  %s208, 512, %s205, %s193
        $region40: #{tpu_custom_call.1} parent=27 // pred_fallthru
          _
      $region28: #{tpu_custom_call.1} parent=5 // pred_fallthru
        _
      %p211 = scmp.le.s32.totalorder 2, %s15
      // Predicated region
      $region41: #{tpu_custom_call.1} parent=5 // pred_check
        %p212 = pneg %p211
      $region42: #{tpu_custom_call.1} parent=5 // pred_check_branch
        %214 = sbr.rel (%p212) target = $region44
      $region43: #{tpu_custom_call.1} parent=5 // pred_region
        %s215 = ssub.s32 %s15, 2
        // Predicated region
        $region45: #{tpu_custom_call.1} parent=43 // pred_check
          %p216 = pneg %p91
        $region46: #{tpu_custom_call.1} parent=43 // pred_check_branch
          %218 = sbr.rel (%p216) target = $region48
        $region47: #{tpu_custom_call.1} parent=43 // pred_region
          %s219 = sand.u32 %s76, 1
          %s220 = scalar_lea.sflag [#allocation4], %s219
          %s221 = sand.u32 %s76, 1
          %s222 = smul.addr %s221, 32
          %s223 = scalar_lea.vmem [#allocation7], %s222
          %224 = dma.done %s220, 512
        $region48: #{tpu_custom_call.1} parent=43 // pred_fallthru
          _
      $region44: #{tpu_custom_call.1} parent=5 // pred_fallthru
        _
    $region6: #{tpu_custom_call.1} parent=1 // loop_footer
      %s19 = sadd.s32 1, %s15
    $region7: #{tpu_custom_call.1} parent=1 // loop_footer_branch
      %14 = sbr.rel target = $region3
    $region8: #{tpu_custom_call.1} parent=1 // loop_exit
      _
    %225 = vsyncpa [#allocation3], 1
    %s226 = scalar_lea.sflag [#allocation3], 1
    %227 = vsyncpa %s226, 1
    %228 = vsyncpa [#allocation4], 1
    %s229 = scalar_lea.sflag [#allocation4], 1
    %230 = vsyncpa %s229, 1
    %231 = vsyncpa [#allocation5], 1
    %s232 = scalar_lea.sflag [#allocation5], 1
    %233 = vsyncpa %s232, 1

</llo_original>
